<compile_context>
chip_gen: v5e
topology: v5e:2x2
jax: 0.10.0
libtpu: 0.0.40
codegen_flags: <defaults>
</compile_context>

<pallas_src>
import functools

import jax
import jax.numpy as jnp
from jax.experimental import pallas as pl
from jax.experimental.pallas import tpu as pltpu

EPS = 1e-5  # PyTorch BatchNorm1d default eps

# bf16 operands feed the MXU natively on v5e/v6e/v7x; accumulation is f32 via
# preferred_element_type and all BN statistics are computed in f32.
# Set to jnp.float32 for bit-faithful f32 matmuls.
MATMUL_DTYPE = jnp.bfloat16


def encoder_kernel(x_ref, w1_ref, w2_ref, w3_ref, aux_ref, o_ref, *,
                   c1, c2, c3, batch, pts):
    """Fused 3-layer 1x1-conv MLP with train-mode BatchNorm + ReLU.

    x_ref   : (M, Cin)      point-major input, M = batch*pts (bf16)
    w*_ref  : (Cout, Cin)   conv weights (bf16)
    aux_ref : (Cmax, 8)     packed per-channel f32 params:
                            col 0 = BN1 gamma, 1 = BN1 beta,
                            col 2 = BN2 gamma, 3 = BN2 beta, 4 = final bias
    o_ref   : (batch, c3, pts)   PyTorch output layout, f32
    """
    inv_m = 1.0 / float(batch * pts)

    x = x_ref[...]                                            # (M, Cin) bf16

    # Layer 1: z1[c, m] = sum_k W1[c, k] * x[m, k]   ("A @ B^T" form keeps x
    # point-major; no explicit transpose of the activation slab).
    z1 = jax.lax.dot_general(
        w1_ref[...], x,
        dimension_numbers=(((1,), (1,)), ((), ())),
        preferred_element_type=jnp.float32)                   # (c1, M) f32

    def bn_relu(z, gamma, beta):
        # Train-mode BatchNorm1d: per-channel batch stats over all B*N points,
        # biased variance.  One-pass stats + fused scale/shift, all in f32.
        s = jnp.sum(z, axis=1, keepdims=True)                 # (C, 1)
        ss = jnp.sum(z * z, axis=1, keepdims=True)            # (C, 1)
        mean = s * inv_m
        var = ss * inv_m - mean * mean
        scale = gamma * jax.lax.rsqrt(var + EPS)
        shift = beta - mean * scale
        return jnp.maximum(z * scale + shift, 0.0)

    g1 = aux_ref[0:c1, 0:1]
    be1 = aux_ref[0:c1, 1:2]
    g2 = aux_ref[0:c2, 2:3]
    be2 = aux_ref[0:c2, 3:4]
    b3 = aux_ref[0:c3, 4:5]

    h1 = bn_relu(z1, g1, be1).astype(MATMUL_DTYPE)            # (c1, M)
    z2 = jnp.dot(w2_ref[...], h1,
                 preferred_element_type=jnp.float32)          # (c2, M) f32
    h2 = bn_relu(z2, g2, be2).astype(MATMUL_DTYPE)            # (c2, M)
    z3 = jnp.dot(w3_ref[...], h2,
                 preferred_element_type=jnp.float32) + b3     # (c3, M) f32

    out = z3.astype(o_ref.dtype)
    # Emit (B, feature_dim, N) directly: static per-batch lane slices, so the
    # wrapper needs no reshape/transpose HBM pass.  Lane-dense along N.
    for b in range(batch):
        o_ref[b, :, :] = out[:, b * pts:(b + 1) * pts]


def init_params(key, feature_dim, layers, cin=33):
    """Deterministic synthetic params matching MLP([33] + layers + [feature_dim]).

    Conv biases of layers 1/2 are intentionally omitted: they are mathematically
    cancelled by the train-mode BatchNorm mean subtraction.  The final conv bias
    is kept (nn.init.constant_(..., 0.0)) inside the packed aux array.
    """
    channels = [cin] + list(layers) + [feature_dim]
    assert len(channels) == 4, "kernel is specialized to the 3-layer MLP of DescriptorEncoder"
    c1, c2, c3 = channels[1], channels[2], channels[3]
    cmax = max(c1, c2, c3)

    keys = jax.random.split(key, 3)
    weights = []
    for i in range(1, 4):
        fan_in, cout = channels[i - 1], channels[i]
        bound = 1.0 / jnp.sqrt(jnp.float32(fan_in))
        w = jax.random.uniform(keys[i - 1], (cout, fan_in), jnp.float32, -bound, bound)
        weights.append(w.astype(MATMUL_DTYPE))            # (Cout, Cin) == PyTorch weight[:, :, 0]

    aux = jnp.zeros((cmax, 8), jnp.float32)
    aux = aux.at[:c1, 0].set(1.0)      # BN1 gamma (beta in col 1 stays 0)
    aux = aux.at[:c2, 2].set(1.0)      # BN2 gamma (beta in col 3 stays 0)
    # col 4: final conv bias, zero per nn.init.constant_(encoder[-1].bias, 0.0)
    return weights[0], weights[1], weights[2], aux


def _full_spec(shape):
    nd = len(shape)
    return pl.BlockSpec(shape, lambda i, _nd=nd: (0,) * _nd)


def descriptor_encoder_forward(kpts, params):
    """kpts: (B, N, 33) float32  ->  (B, feature_dim, N) float32 (PyTorch layout)."""
    w1, w2, w3, aux = params
    B, N, cin = kpts.shape
    M = B * N
    c1 = w1.shape[0]
    c2 = w2.shape[0]
    c3 = w3.shape[0]
    assert w1.shape[1] == cin and w2.shape[1] == c1 and w3.shape[1] == c2

    # (B, N, Cin) -> (M, Cin) is a free row-major reshape (no transpose).
    x = kpts.reshape(M, cin).astype(MATMUL_DTYPE)

    kernel = functools.partial(encoder_kernel, c1=c1, c2=c2, c3=c3, batch=B, pts=N)

    out = pl.pallas_call(
        kernel,
        out_shape=jax.ShapeDtypeStruct((B, c3, N), jnp.float32),
        grid=(1,),
        in_specs=[
            _full_spec(x.shape),
            _full_spec(w1.shape),
            _full_spec(w2.shape),
            _full_spec(w3.shape),
            _full_spec(aux.shape),
        ],
        out_specs=_full_spec((B, c3, N)),
        compiler_params=pltpu.CompilerParams(
            dimension_semantics=("arbitrary",),
        ),
    )(x, w1, w2, w3, aux)
    return out


if __name__ == "__main__":
    key = jax.random.PRNGKey(0)
    kp_key, p_key = jax.random.split(key)

    B, N = 2, 16
    feature_dim = 32
    layers = [32, 64]                      # MLP channels: [33, 32, 64, 32]

    kpts = jax.random.normal(kp_key, (B, N, 33), dtype=jnp.float32)
    params = init_params(p_key, feature_dim, layers)

    out = descriptor_encoder_forward(kpts, params)
    jax.block_until_ready(out)
    assert out.shape == (B, feature_dim, N)
    assert out.dtype == jnp.float32
    print("KERNEL_OK")
</pallas_src>

<mosaic_0001>
module attributes {stable_mosaic.version = 11 : i64} {
  func.func @encoder_kernel(%arg0: i32, %arg1: memref<32x33xbf16, #tpu.memory_space<vmem>>, %arg2: memref<32x33xbf16, #tpu.memory_space<vmem>>, %arg3: memref<64x32xbf16, #tpu.memory_space<vmem>>, %arg4: memref<32x64xbf16, #tpu.memory_space<vmem>>, %arg5: memref<64x8xf32, #tpu.memory_space<vmem>>, %arg6: memref<2x32x16xf32, #tpu.memory_space<vmem>>) attributes {dimension_semantics = [#tpu.dimension_semantics<arbitrary>], iteration_bounds = array<i64: 1>, scalar_prefetch = 0 : i64, scratch_operands = 0 : i64, tpu.core_type = #tpu.core_type<tc>, window_params = [{pipeline_mode = #tpu.pipeline_mode<synchronous>, transform_indices = @transform_0, window_bounds = array<i64: 32, 33>}, {pipeline_mode = #tpu.pipeline_mode<synchronous>, transform_indices = @transform_1, window_bounds = array<i64: 32, 33>}, {pipeline_mode = #tpu.pipeline_mode<synchronous>, transform_indices = @transform_2, window_bounds = array<i64: 64, 32>}, {pipeline_mode = #tpu.pipeline_mode<synchronous>, transform_indices = @transform_3, window_bounds = array<i64: 32, 64>}, {pipeline_mode = #tpu.pipeline_mode<synchronous>, transform_indices = @transform_4, window_bounds = array<i64: 64, 8>}, {pipeline_mode = #tpu.pipeline_mode<synchronous>, transform_indices = @transform_5, window_bounds = array<i64: 2, 32, 16>}]} {
    %c0 = arith.constant 0 : index
    %c0_0 = arith.constant 0 : index
    %0 = vector.load %arg1[%c0, %c0_0] : memref<32x33xbf16, #tpu.memory_space<vmem>>, vector<32x33xbf16>
    %c0_1 = arith.constant 0 : index
    %c0_2 = arith.constant 0 : index
    %1 = vector.load %arg2[%c0_1, %c0_2] : memref<32x33xbf16, #tpu.memory_space<vmem>>, vector<32x33xbf16>
    %cst = arith.constant dense<0.000000e+00> : vector<32x32xf32>
    %2 = tpu.matmul %1, %0, %cst {dimension_numbers = #tpu.dot_dimension_numbers<[1], [1], [0], [0], [0, 0, 1, 0], [], []>} : vector<32x33xbf16>, vector<32x33xbf16>, vector<32x32xf32> -> vector<32x32xf32>
    %c0_3 = arith.constant 0 : index
    %c0_4 = arith.constant 0 : index
    %3 = vector.load %arg5[%c0_3, %c0_4] : memref<64x8xf32, #tpu.memory_space<vmem>>, vector<32x1xf32>
    %c0_5 = arith.constant 0 : index
    %c1 = arith.constant 1 : index
    %4 = vector.load %arg5[%c0_5, %c1] : memref<64x8xf32, #tpu.memory_space<vmem>>, vector<32x1xf32>
    %c0_6 = arith.constant 0 : index
    %c2 = arith.constant 2 : index
    %5 = vector.load %arg5[%c0_6, %c2] : memref<64x8xf32, #tpu.memory_space<vmem>>, vector<64x1xf32>
    %c0_7 = arith.constant 0 : index
    %c3 = arith.constant 3 : index
    %6 = vector.load %arg5[%c0_7, %c3] : memref<64x8xf32, #tpu.memory_space<vmem>>, vector<64x1xf32>
    %c0_8 = arith.constant 0 : index
    %c4 = arith.constant 4 : index
    %7 = vector.load %arg5[%c0_8, %c4] : memref<64x8xf32, #tpu.memory_space<vmem>>, vector<32x1xf32>
    %cst_9 = arith.constant dense<0.000000e+00> : vector<32xf32>
    %8 = vector.multi_reduction <add>, %2, %cst_9 [1] : vector<32x32xf32> to vector<32xf32>
    %9 = vector.shape_cast %8 : vector<32xf32> to vector<32x1xf32>
    %10 = arith.mulf %2, %2 : vector<32x32xf32>
    %cst_10 = arith.constant dense<0.000000e+00> : vector<32xf32>
    %11 = vector.multi_reduction <add>, %10, %cst_10 [1] : vector<32x32xf32> to vector<32xf32>
    %12 = vector.shape_cast %11 : vector<32xf32> to vector<32x1xf32>
    %cst_11 = arith.constant 3.125000e-02 : f32
    %13 = vector.broadcast %cst_11 : f32 to vector<32x1xf32>
    %14 = arith.mulf %9, %13 : vector<32x1xf32>
    %cst_12 = arith.constant 3.125000e-02 : f32
    %15 = vector.broadcast %cst_12 : f32 to vector<32x1xf32>
    %16 = arith.mulf %12, %15 : vector<32x1xf32>
    %17 = arith.mulf %14, %14 : vector<32x1xf32>
    %18 = arith.subf %16, %17 : vector<32x1xf32>
    %cst_13 = arith.constant 9.99999974E-6 : f32
    %19 = vector.broadcast %cst_13 : f32 to vector<32x1xf32>
    %20 = arith.addf %18, %19 : vector<32x1xf32>
    %21 = math.rsqrt %20 : vector<32x1xf32>
    %22 = arith.mulf %3, %21 : vector<32x1xf32>
    %23 = arith.mulf %14, %22 : vector<32x1xf32>
    %24 = arith.subf %4, %23 : vector<32x1xf32>
    %25 = vector.broadcast %22 : vector<32x1xf32> to vector<32x32xf32>
    %26 = arith.mulf %2, %25 : vector<32x32xf32>
    %27 = vector.broadcast %24 : vector<32x1xf32> to vector<32x32xf32>
    %28 = arith.addf %26, %27 : vector<32x32xf32>
    %cst_14 = arith.constant 0.000000e+00 : f32
    %29 = vector.broadcast %cst_14 : f32 to vector<32x32xf32>
    %30 = arith.maximumf %28, %29 : vector<32x32xf32>
    %31 = arith.truncf %30 : vector<32x32xf32> to vector<32x32xbf16>
    %c0_15 = arith.constant 0 : index
    %c0_16 = arith.constant 0 : index
    %32 = vector.load %arg3[%c0_15, %c0_16] : memref<64x32xbf16, #tpu.memory_space<vmem>>, vector<64x32xbf16>
    %cst_17 = arith.constant dense<0.000000e+00> : vector<64x32xf32>
    %33 = tpu.matmul %32, %31, %cst_17 {dimension_numbers = #tpu.dot_dimension_numbers<[1], [0], [0], [1], [0, 0, 1, 1], [], []>} : vector<64x32xbf16>, vector<32x32xbf16>, vector<64x32xf32> -> vector<64x32xf32>
    %cst_18 = arith.constant dense<0.000000e+00> : vector<64xf32>
    %34 = vector.multi_reduction <add>, %33, %cst_18 [1] : vector<64x32xf32> to vector<64xf32>
    %35 = vector.shape_cast %34 : vector<64xf32> to vector<64x1xf32>
    %36 = arith.mulf %33, %33 : vector<64x32xf32>
    %cst_19 = arith.constant dense<0.000000e+00> : vector<64xf32>
    %37 = vector.multi_reduction <add>, %36, %cst_19 [1] : vector<64x32xf32> to vector<64xf32>
    %38 = vector.shape_cast %37 : vector<64xf32> to vector<64x1xf32>
    %cst_20 = arith.constant 3.125000e-02 : f32
    %39 = vector.broadcast %cst_20 : f32 to vector<64x1xf32>
    %40 = arith.mulf %35, %39 : vector<64x1xf32>
    %cst_21 = arith.constant 3.125000e-02 : f32
    %41 = vector.broadcast %cst_21 : f32 to vector<64x1xf32>
    %42 = arith.mulf %38, %41 : vector<64x1xf32>
    %43 = arith.mulf %40, %40 : vector<64x1xf32>
    %44 = arith.subf %42, %43 : vector<64x1xf32>
    %cst_22 = arith.constant 9.99999974E-6 : f32
    %45 = vector.broadcast %cst_22 : f32 to vector<64x1xf32>
    %46 = arith.addf %44, %45 : vector<64x1xf32>
    %47 = math.rsqrt %46 : vector<64x1xf32>
    %48 = arith.mulf %5, %47 : vector<64x1xf32>
    %49 = arith.mulf %40, %48 : vector<64x1xf32>
    %50 = arith.subf %6, %49 : vector<64x1xf32>
    %51 = vector.broadcast %48 : vector<64x1xf32> to vector<64x32xf32>
    %52 = arith.mulf %33, %51 : vector<64x32xf32>
    %53 = vector.broadcast %50 : vector<64x1xf32> to vector<64x32xf32>
    %54 = arith.addf %52, %53 : vector<64x32xf32>
    %cst_23 = arith.constant 0.000000e+00 : f32
    %55 = vector.broadcast %cst_23 : f32 to vector<64x32xf32>
    %56 = arith.maximumf %54, %55 : vector<64x32xf32>
    %57 = arith.truncf %56 : vector<64x32xf32> to vector<64x32xbf16>
    %c0_24 = arith.constant 0 : index
    %c0_25 = arith.constant 0 : index
    %58 = vector.load %arg4[%c0_24, %c0_25] : memref<32x64xbf16, #tpu.memory_space<vmem>>, vector<32x64xbf16>
    %cst_26 = arith.constant dense<0.000000e+00> : vector<32x32xf32>
    %59 = tpu.matmul %58, %57, %cst_26 {dimension_numbers = #tpu.dot_dimension_numbers<[1], [0], [0], [1], [0, 0, 1, 1], [], []>} : vector<32x64xbf16>, vector<64x32xbf16>, vector<32x32xf32> -> vector<32x32xf32>
    %60 = vector.broadcast %7 : vector<32x1xf32> to vector<32x32xf32>
    %61 = arith.addf %59, %60 : vector<32x32xf32>
    %62 = vector.extract_strided_slice %61 {offsets = [0, 0], sizes = [32, 16], strides = [1, 1]} : vector<32x32xf32> to vector<32x16xf32>
    %c0_27 = arith.constant 0 : index
    %c0_28 = arith.constant 0 : index
    %c0_29 = arith.constant 0 : index
    %63 = vector.load %arg6[%c0_27, %c0_28, %c0_29] : memref<2x32x16xf32, #tpu.memory_space<vmem>>, vector<1x32x16xf32>
    %64 = vector.shape_cast %63 : vector<1x32x16xf32> to vector<32x16xf32>
    %65 = vector.shape_cast %62 : vector<32x16xf32> to vector<1x32x16xf32>
    tpu.vector_store %arg6[%c0_27, %c0_28, %c0_29], %65 {strides = array<i32>} : memref<2x32x16xf32, #tpu.memory_space<vmem>>, vector<1x32x16xf32>,
    %66 = vector.extract_strided_slice %61 {offsets = [0, 16], sizes = [32, 16], strides = [1, 1]} : vector<32x32xf32> to vector<32x16xf32>
    %c1_30 = arith.constant 1 : index
    %c0_31 = arith.constant 0 : index
    %c0_32 = arith.constant 0 : index
    %67 = vector.load %arg6[%c1_30, %c0_31, %c0_32] : memref<2x32x16xf32, #tpu.memory_space<vmem>>, vector<1x32x16xf32>
    %68 = vector.shape_cast %67 : vector<1x32x16xf32> to vector<32x16xf32>
    %69 = vector.shape_cast %66 : vector<32x16xf32> to vector<1x32x16xf32>
    tpu.vector_store %arg6[%c1_30, %c0_31, %c0_32], %69 {strides = array<i32>} : memref<2x32x16xf32, #tpu.memory_space<vmem>>, vector<1x32x16xf32>,
    return
  }
  func.func @transform_0(%arg0: i32) -> (i32, i32) {
    %c0_i32 = arith.constant 0 : i32
    %c0_i32_0 = arith.constant 0 : i32
    %c0_i32_1 = arith.constant 0 : i32
    return %c0_i32, %c0_i32_0 : i32, i32
  }
  func.func @transform_1(%arg0: i32) -> (i32, i32) {
    %c0_i32 = arith.constant 0 : i32
    %c0_i32_0 = arith.constant 0 : i32
    %c0_i32_1 = arith.constant 0 : i32
    return %c0_i32, %c0_i32_0 : i32, i32
  }
  func.func @transform_2(%arg0: i32) -> (i32, i32) {
    %c0_i32 = arith.constant 0 : i32
    %c0_i32_0 = arith.constant 0 : i32
    %c0_i32_1 = arith.constant 0 : i32
    return %c0_i32, %c0_i32_0 : i32, i32
  }
  func.func @transform_3(%arg0: i32) -> (i32, i32) {
    %c0_i32 = arith.constant 0 : i32
    %c0_i32_0 = arith.constant 0 : i32
    %c0_i32_1 = arith.constant 0 : i32
    return %c0_i32, %c0_i32_0 : i32, i32
  }
  func.func @transform_4(%arg0: i32) -> (i32, i32) {
    %c0_i32 = arith.constant 0 : i32
    %c0_i32_0 = arith.constant 0 : i32
    %c0_i32_1 = arith.constant 0 : i32
    return %c0_i32, %c0_i32_0 : i32, i32
  }
  func.func @transform_5(%arg0: i32) -> (i32, i32, i32) {
    %c0_i32 = arith.constant 0 : i32
    %c0_i32_0 = arith.constant 0 : i32
    %c0_i32_1 = arith.constant 0 : i32
    %c0_i32_2 = arith.constant 0 : i32
    return %c0_i32, %c0_i32_0, %c0_i32_1 : i32, i32, i32
  }
}

</mosaic_0001>

<llo_original>
// kernel: tpu_custom_call.1
$region0: #{tpu_custom_call.1}
  #allocation0 [shape = 'u32[]', space=smem, size = 0x4, offset = 0x4, fixed_abs, tag = 'smem constant byte address 0x4 - core index']
  #allocation1 [shape = 'u32[72,128]{1,0:T(1,128)}', space=vmem, size = 0x9000, scoped, tag = 'internal scratch']
  %s0 = inlined_call_operand.vmem [shape: bf16[32,33], index: 0, kind: input, shape index: {}]
  %s1 = inlined_call_operand.vmem [shape: bf16[32,33], index: 1, kind: input, shape index: {}]
  %s2 = inlined_call_operand.vmem [shape: bf16[64,32], index: 2, kind: input, shape index: {}]
  %s3 = inlined_call_operand.vmem [shape: bf16[32,64], index: 3, kind: input, shape index: {}]
  %s4 = inlined_call_operand.vmem [shape: f32[64,8], index: 4, kind: input, shape index: {}]
  %s5 = inlined_call_operand.vmem [shape: f32[2,32,16], index: 5, kind: output, shape index: {}]
  %s6 = sld [smem:[#allocation0]]
  $region30: #{tpu_custom_call.1} parent=0
    _
  %s8 = ssub.s32 1, %s6
  %s9 = scalar_select 0, %s8, %s6
  // Predicated region
  $region2: #{tpu_custom_call.1} parent=0 // pred_check
    _
  $region3: #{tpu_custom_call.1} parent=0 // pred_check_branch
    %11 = sbr.rel (0) target = $region5
  $region4: #{tpu_custom_call.1} parent=0 // pred_region
    _
  $region5: #{tpu_custom_call.1} parent=0 // pred_fallthru
    _
  // Predicated region
  $region6: #{tpu_custom_call.1} parent=0 // pred_check
    _
  $region7: #{tpu_custom_call.1} parent=0 // pred_check_branch
    %13 = sbr.rel (0) target = $region9
  $region8: #{tpu_custom_call.1} parent=0 // pred_region
    _
  $region9: #{tpu_custom_call.1} parent=0 // pred_fallthru
    _
  // Predicated region
  $region10: #{tpu_custom_call.1} parent=0 // pred_check
    _
  $region11: #{tpu_custom_call.1} parent=0 // pred_check_branch
    %15 = sbr.rel (0) target = $region13
  $region12: #{tpu_custom_call.1} parent=0 // pred_region
    _
  $region13: #{tpu_custom_call.1} parent=0 // pred_fallthru
    _
  // Predicated region
  $region14: #{tpu_custom_call.1} parent=0 // pred_check
    _
  $region15: #{tpu_custom_call.1} parent=0 // pred_check_branch
    %17 = sbr.rel (0) target = $region17
  $region16: #{tpu_custom_call.1} parent=0 // pred_region
    _
  $region17: #{tpu_custom_call.1} parent=0 // pred_fallthru
    _
  // Predicated region
  $region18: #{tpu_custom_call.1} parent=0 // pred_check
    _
  $region19: #{tpu_custom_call.1} parent=0 // pred_check_branch
    %19 = sbr.rel (0) target = $region21
  $region20: #{tpu_custom_call.1} parent=0 // pred_region
    _
  $region21: #{tpu_custom_call.1} parent=0 // pred_fallthru
    _
  %v21 = vld [vmem:[%s0] sm:$0xf]
  %v22 = vld [vmem:[%s0 + $0x4] sm:$0xf]
  %v23 = vld [vmem:[%s0 + $0x8] sm:$0xf]
  %v24 = vld [vmem:[%s0 + $0xc] sm:$0xf]
  %v25 = vld [vmem:[%s1] sm:$0xf]
  %v26 = vld [vmem:[%s1 + $0x4] sm:$0xf]
  %v27 = vld [vmem:[%s1 + $0x8] sm:$0xf]
  %v28 = vld [vmem:[%s1 + $0xc] sm:$0xf]
  %v33 = vunpack.c.l.b16 %v25
  %v34 = vunpack.c.l.b16 %v26
  %v35 = vunpack.c.l.b16 %v27
  %v36 = vunpack.c.l.b16 %v28
  %v37 = vpack.c.b16 %v34, %v33
  %v38 = vpack.c.b16 %v36, %v35
  %v43 = vunpack.c.l.b16 %v21
  %v44 = vunpack.c.l.b16 %v22
  %v45 = vunpack.c.l.b16 %v23
  %v46 = vunpack.c.l.b16 %v24
  %v47 = vpack.c.b16 %v44, %v43
  %v48 = vpack.c.b16 %v46, %v45
  %vm49 = vcmask 269312
  %v51 = vsel %vm49, %v37, 0
  %v54 = vsel %vm49, %v38, 0
  %v57 = vsel %vm49, %v47, 0
  %v60 = vsel %vm49, %v48, 0
  %62 = vmatpush.bf16.xpose.msra.mxu0 0
  %63 = vmatpush.bf16.xpose.msra.mxu0 0
  %64 = vmatpush.bf16.xpose.msra.mxu0 0
  %65 = vmatpush.bf16.xpose.msra.mxu0 0
  %66 = vmatpush.bf16.xpose.msra.mxu0 0
  %67 = vmatpush.bf16.xpose.msra.mxu0 0
  %68 = vmatpush.bf16.xpose.msra.mxu0 %v60
  %69 = vmatpush.bf16.xpose.msra.mxu0 %v57
  %70 = vmatmul.bf16.gmra.mxu0 %v51
  %v71 = vpop.f32.mrf.mxu0
  %v72 = vadd.f32 0.0, %v71
  %v73 = vpop.f32.mrf.mxu0
  %v74 = vadd.f32 0.0, %v73
  %75 = vmatmul.bf16.gmra.mxu0 %v54
  %v76 = vpop.f32.mrf.mxu0
  %v77 = vadd.f32 0.0, %v76
  %v78 = vpop.f32.mrf.mxu0
  %v79 = vadd.f32 0.0, %v78
  %80 = vdwg.mxu0
  %v81 = vld [vmem:[%s4] sm:$0xff]
  %v82 = vld [vmem:[%s4 + $0x8] sm:$0xff]
  %v83 = vld [vmem:[%s4 + $0x10] sm:$0xff]
  %v84 = vld [vmem:[%s4 + $0x18] sm:$0xff]
  %v85 = vld [vmem:[%s4 + $0x20] sm:$0xff]
  %v86 = vld [vmem:[%s4 + $0x28] sm:$0xff]
  %v87 = vld [vmem:[%s4 + $0x30] sm:$0xff]
  %v88 = vld [vmem:[%s4 + $0x38] sm:$0xff]
  %vm89 = vcmask 261120
  %v90 = vsel %vm89, %v72, 0.0
  %91 = vadd.xlane.f32.xlu0 %v90
  %v92 = vpop.xlane.xlu0 %91
  %v93 = vsel %vm89, %v74, 0.0
  %94 = vadd.xlane.f32.xlu0 %v93
  %v95 = vpop.xlane.xlu0 %94
  %v96 = vsel %vm89, %v77, 0.0
  %97 = vadd.xlane.f32.xlu0 %v96
  %v98 = vpop.xlane.xlu0 %97
  %v99 = vsel %vm89, %v79, 0.0
  %100 = vadd.xlane.f32.xlu0 %v99
  %v101 = vpop.xlane.xlu0 %100
  %v102 = vmul.f32 %v72, %v72
  %v103 = vmul.f32 %v74, %v74
  %v104 = vmul.f32 %v77, %v77
  %v105 = vmul.f32 %v79, %v79
  %v106 = vsel %vm89, %v102, 0.0
  %107 = vadd.xlane.f32.xlu0 %v106
  %v108 = vpop.xlane.xlu0 %107
  %v109 = vsel %vm89, %v103, 0.0
  %110 = vadd.xlane.f32.xlu0 %v109
  %v111 = vpop.xlane.xlu0 %110
  %v112 = vsel %vm89, %v104, 0.0
  %113 = vadd.xlane.f32.xlu0 %v112
  %v114 = vpop.xlane.xlu0 %113
  %v115 = vsel %vm89, %v105, 0.0
  %116 = vadd.xlane.f32.xlu0 %v115
  %v117 = vpop.xlane.xlu0 %116
  %v118 = vmul.f32 %v92, 0.03125
  %v119 = vmul.f32 %v95, 0.03125
  %v120 = vmul.f32 %v98, 0.03125
  %v121 = vmul.f32 %v101, 0.03125
  %v122 = vmul.f32 %v108, 0.03125
  %v123 = vmul.f32 %v111, 0.03125
  %v124 = vmul.f32 %v114, 0.03125
  %v125 = vmul.f32 %v117, 0.03125
  %v126 = vmul.f32 %v118, %v118
  %v127 = vmul.f32 %v119, %v119
  %v128 = vmul.f32 %v120, %v120
  %v129 = vmul.f32 %v121, %v121
  %v130 = vsub.f32 %v122, %v126
  %v131 = vsub.f32 %v123, %v127
  %v132 = vsub.f32 %v124, %v128
  %v133 = vsub.f32 %v125, %v129
  %v134 = vadd.f32 %v130, 1e-05
  %v135 = vadd.f32 %v131, 1e-05
  %v136 = vadd.f32 %v132, 1e-05
  %v137 = vadd.f32 %v133, 1e-05
  %v138 = vrsqrt.pop %v134
  %v139 = vmul.f32 %v138, %v134
  %v140 = vmul.f32 %v139, %v138
  %v141 = vmul.f32 0.5, %v140
  %v142 = vsub.f32 1.5, %v141
  %v143 = vmul.f32 %v138, %v142
  %vm144 = vweird.f32 %v134
  %vm145 = vweird.f32 %v138
  %vm146 = vmor %vm144, %vm145
  %v147 = vsel %vm146, %v138, %v143
  %v148 = vrsqrt.pop %v135
  %v149 = vmul.f32 %v148, %v135
  %v150 = vmul.f32 %v149, %v148
  %v151 = vmul.f32 0.5, %v150
  %v152 = vsub.f32 1.5, %v151
  %v153 = vmul.f32 %v148, %v152
  %vm154 = vweird.f32 %v135
  %vm155 = vweird.f32 %v148
  %vm156 = vmor %vm154, %vm155
  %v157 = vsel %vm156, %v148, %v153
  %v158 = vrsqrt.pop %v136
  %v159 = vmul.f32 %v158, %v136
  %v160 = vmul.f32 %v159, %v158
  %v161 = vmul.f32 0.5, %v160
  %v162 = vsub.f32 1.5, %v161
  %v163 = vmul.f32 %v158, %v162
  %vm164 = vweird.f32 %v136
  %vm165 = vweird.f32 %v158
  %vm166 = vmor %vm164, %vm165
  %v167 = vsel %vm166, %v158, %v163
  %v168 = vrsqrt.pop %v137
  %v169 = vmul.f32 %v168, %v137
  %v170 = vmul.f32 %v169, %v168
  %v171 = vmul.f32 0.5, %v170
  %v172 = vsub.f32 1.5, %v171
  %v173 = vmul.f32 %v168, %v172
  %vm174 = vweird.f32 %v137
  %vm175 = vweird.f32 %v168
  %vm176 = vmor %vm174, %vm175
  %v177 = vsel %vm176, %v168, %v173
  %v178 = vmul.f32 %v81, %v147
  %v179 = vmul.f32 %v82, %v157
  %v180 = vmul.f32 %v83, %v167
  %v181 = vmul.f32 %v84, %v177
  %v182 = vmul.f32 %v118, %v178
  %v183 = vmul.f32 %v119, %v179
  %v184 = vmul.f32 %v120, %v180
  %v185 = vmul.f32 %v121, %v181
  %190 = vrot.lane.b32.xlu0 %v182, 1
  %v191 = vpop.permute.xlu0 %190
  %192 = vrot.lane.b32.xlu0 %v183, 1
  %v193 = vpop.permute.xlu0 %192
  %194 = vrot.lane.b32.xlu0 %v184, 1
  %v195 = vpop.permute.xlu0 %194
  %196 = vrot.lane.b32.xlu0 %v185, 1
  %v197 = vpop.permute.xlu0 %196
  %v202 = vsub.f32 %v81, %v191
  %v203 = vsub.f32 %v82, %v193
  %v204 = vsub.f32 %v83, %v195
  %v205 = vsub.f32 %v84, %v197
  %207 = vset.pattern.permute.xlu0 0
  %208 = vperm.xlu0 %207, %v178
  %v209 = vpop.permute.xlu0 %208
  %212 = vset.pattern.permute.xlu0 0
  %213 = vperm.xlu0 %212, %v179
  %v214 = vpop.permute.xlu0 %213
  %217 = vset.pattern.permute.xlu0 0
  %218 = vperm.xlu0 %217, %v180
  %v219 = vpop.permute.xlu0 %218
  %222 = vset.pattern.permute.xlu0 0
  %223 = vperm.xlu0 %222, %v181
  %v224 = vpop.permute.xlu0 %223
  %v226 = vmul.f32 %v72, %v209
  %v227 = vmul.f32 %v74, %v214
  %v228 = vmul.f32 %v77, %v219
  %v229 = vmul.f32 %v79, %v224
  %231 = vset.pattern.permute.xlu0 1
  %232 = vperm.xlu0 %231, %v202
  %v233 = vpop.permute.xlu0 %232
  %236 = vset.pattern.permute.xlu0 1
  %237 = vperm.xlu0 %236, %v203
  %v238 = vpop.permute.xlu0 %237
  %241 = vset.pattern.permute.xlu0 1
  %242 = vperm.xlu0 %241, %v204
  %v243 = vpop.permute.xlu0 %242
  %246 = vset.pattern.permute.xlu0 1
  %247 = vperm.xlu0 %246, %v205
  %v248 = vpop.permute.xlu0 %247
  %v250 = vadd.f32 %v226, %v233
  %v251 = vadd.f32 %v227, %v238
  %v252 = vadd.f32 %v228, %v243
  %v253 = vadd.f32 %v229, %v248
  %v254 = vmax.f32 %v250, 0.0
  %v255 = vmax.f32 %v251, 0.0
  %v256 = vmax.f32 %v252, 0.0
  %v257 = vmax.f32 %v253, 0.0
  %v258 = vpack.c.bf16 %v255, %v254
  %v259 = vpack.c.bf16 %v257, %v256
  %v260 = vld [vmem:[%s2] sm:$0xf]
  %v261 = vld [vmem:[%s2 + $0x4] sm:$0xf]
  %v262 = vld [vmem:[%s2 + $0x8] sm:$0xf]
  %v263 = vld [vmem:[%s2 + $0xc] sm:$0xf]
  %v264 = vld [vmem:[%s2 + $0x10] sm:$0xf]
  %v265 = vld [vmem:[%s2 + $0x14] sm:$0xf]
  %v266 = vld [vmem:[%s2 + $0x18] sm:$0xf]
  %v267 = vld [vmem:[%s2 + $0x1c] sm:$0xf]
  %v276 = vunpack.c.l.b16 %v260
  %v277 = vunpack.c.l.b16 %v261
  %v278 = vunpack.c.l.b16 %v262
  %v279 = vunpack.c.l.b16 %v263
  %v280 = vunpack.c.l.b16 %v264
  %v281 = vunpack.c.l.b16 %v265
  %v282 = vunpack.c.l.b16 %v266
  %v283 = vunpack.c.l.b16 %v267
  %v284 = vpack.c.b16 %v277, %v276
  %v285 = vpack.c.b16 %v279, %v278
  %v286 = vpack.c.b16 %v281, %v280
  %v287 = vpack.c.b16 %v283, %v282
  %v289 = vsel %vm89, %v284, 0
  %v292 = vsel %vm89, %v285, 0
  %v295 = vsel %vm89, %v286, 0
  %v298 = vsel %vm89, %v287, 0
  %300 = vmatpush.bf16.msra.mxu0 0
  %301 = vmatpush.bf16.msra.mxu0 0
  %302 = vmatpush.bf16.msra.mxu0 0
  %303 = vmatpush.bf16.msra.mxu0 0
  %304 = vmatpush.bf16.msra.mxu0 0
  %305 = vmatpush.bf16.msra.mxu0 0
  %306 = vmatpush.bf16.msra.mxu0 %v259
  %307 = vmatpush.bf16.msra.mxu0 %v258
  %308 = vmatmul.bf16.gmra.mxu0 %v289
  %v309 = vpop.f32.mrf.mxu0
  %v310 = vadd.f32 0.0, %v309
  %v311 = vpop.f32.mrf.mxu0
  %v312 = vadd.f32 0.0, %v311
  %313 = vmatmul.bf16.gmra.mxu0 %v292
  %v314 = vpop.f32.mrf.mxu0
  %v315 = vadd.f32 0.0, %v314
  %v316 = vpop.f32.mrf.mxu0
  %v317 = vadd.f32 0.0, %v316
  %318 = vmatmul.bf16.gmra.mxu0 %v295
  %v319 = vpop.f32.mrf.mxu0
  %v320 = vadd.f32 0.0, %v319
  %v321 = vpop.f32.mrf.mxu0
  %v322 = vadd.f32 0.0, %v321
  %323 = vmatmul.bf16.gmra.mxu0 %v298
  %v324 = vpop.f32.mrf.mxu0
  %v325 = vadd.f32 0.0, %v324
  %v326 = vpop.f32.mrf.mxu0
  %v327 = vadd.f32 0.0, %v326
  %328 = vdwg.mxu0
  %v329 = vsel %vm89, %v310, 0.0
  %330 = vadd.xlane.f32.xlu0 %v329
  %v331 = vpop.xlane.xlu0 %330
  %v332 = vsel %vm89, %v312, 0.0
  %333 = vadd.xlane.f32.xlu0 %v332
  %v334 = vpop.xlane.xlu0 %333
  %v335 = vsel %vm89, %v315, 0.0
  %336 = vadd.xlane.f32.xlu0 %v335
  %v337 = vpop.xlane.xlu0 %336
  %v338 = vsel %vm89, %v317, 0.0
  %339 = vadd.xlane.f32.xlu0 %v338
  %v340 = vpop.xlane.xlu0 %339
  %v341 = vsel %vm89, %v320, 0.0
  %342 = vadd.xlane.f32.xlu0 %v341
  %v343 = vpop.xlane.xlu0 %342
  %v344 = vsel %vm89, %v322, 0.0
  %345 = vadd.xlane.f32.xlu0 %v344
  %v346 = vpop.xlane.xlu0 %345
  %v347 = vsel %vm89, %v325, 0.0
  %348 = vadd.xlane.f32.xlu0 %v347
  %v349 = vpop.xlane.xlu0 %348
  %v350 = vsel %vm89, %v327, 0.0
  %351 = vadd.xlane.f32.xlu0 %v350
  %v352 = vpop.xlane.xlu0 %351
  %v353 = vmul.f32 %v310, %v310
  %v354 = vmul.f32 %v312, %v312
  %v355 = vmul.f32 %v315, %v315
  %v356 = vmul.f32 %v317, %v317
  %v357 = vmul.f32 %v320, %v320
  %v358 = vmul.f32 %v322, %v322
  %v359 = vmul.f32 %v325, %v325
  %v360 = vmul.f32 %v327, %v327
  %v361 = vsel %vm89, %v353, 0.0
  %362 = vadd.xlane.f32.xlu0 %v361
  %v363 = vpop.xlane.xlu0 %362
  %v364 = vsel %vm89, %v354, 0.0
  %365 = vadd.xlane.f32.xlu0 %v364
  %v366 = vpop.xlane.xlu0 %365
  %v367 = vsel %vm89, %v355, 0.0
  %368 = vadd.xlane.f32.xlu0 %v367
  %v369 = vpop.xlane.xlu0 %368
  %v370 = vsel %vm89, %v356, 0.0
  %371 = vadd.xlane.f32.xlu0 %v370
  %v372 = vpop.xlane.xlu0 %371
  %v373 = vsel %vm89, %v357, 0.0
  %374 = vadd.xlane.f32.xlu0 %v373
  %v375 = vpop.xlane.xlu0 %374
  %v376 = vsel %vm89, %v358, 0.0
  %377 = vadd.xlane.f32.xlu0 %v376
  %v378 = vpop.xlane.xlu0 %377
  %v379 = vsel %vm89, %v359, 0.0
  %380 = vadd.xlane.f32.xlu0 %v379
  %v381 = vpop.xlane.xlu0 %380
  %v382 = vsel %vm89, %v360, 0.0
  %383 = vadd.xlane.f32.xlu0 %v382
  %v384 = vpop.xlane.xlu0 %383
  %v385 = vmul.f32 %v331, 0.03125
  %v386 = vmul.f32 %v334, 0.03125
  %v387 = vmul.f32 %v337, 0.03125
  %v388 = vmul.f32 %v340, 0.03125
  %v389 = vmul.f32 %v343, 0.03125
  %v390 = vmul.f32 %v346, 0.03125
  %v391 = vmul.f32 %v349, 0.03125
  %v392 = vmul.f32 %v352, 0.03125
  %v393 = vmul.f32 %v363, 0.03125
  %v394 = vmul.f32 %v366, 0.03125
  %v395 = vmul.f32 %v369, 0.03125
  %v396 = vmul.f32 %v372, 0.03125
  %v397 = vmul.f32 %v375, 0.03125
  %v398 = vmul.f32 %v378, 0.03125
  %v399 = vmul.f32 %v381, 0.03125
  %v400 = vmul.f32 %v384, 0.03125
  %v401 = vmul.f32 %v385, %v385
  %v402 = vmul.f32 %v386, %v386
  %v403 = vmul.f32 %v387, %v387
  %v404 = vmul.f32 %v388, %v388
  %v405 = vmul.f32 %v389, %v389
  %v406 = vmul.f32 %v390, %v390
  %v407 = vmul.f32 %v391, %v391
  %v408 = vmul.f32 %v392, %v392
  %v409 = vsub.f32 %v393, %v401
  %v410 = vsub.f32 %v394, %v402
  %v411 = vsub.f32 %v395, %v403
  %v412 = vsub.f32 %v396, %v404
  %v413 = vsub.f32 %v397, %v405
  %v414 = vsub.f32 %v398, %v406
  %v415 = vsub.f32 %v399, %v407
  %v416 = vsub.f32 %v400, %v408
  %v417 = vadd.f32 %v409, 1e-05
  %v418 = vadd.f32 %v410, 1e-05
  %v419 = vadd.f32 %v411, 1e-05
  %v420 = vadd.f32 %v412, 1e-05
  %v421 = vadd.f32 %v413, 1e-05
  %v422 = vadd.f32 %v414, 1e-05
  %v423 = vadd.f32 %v415, 1e-05
  %v424 = vadd.f32 %v416, 1e-05
  %v425 = vrsqrt.pop %v417
  %v426 = vmul.f32 %v425, %v417
  %v427 = vmul.f32 %v426, %v425
  %v428 = vmul.f32 0.5, %v427
  %v429 = vsub.f32 1.5, %v428
  %v430 = vmul.f32 %v425, %v429
  %vm431 = vweird.f32 %v417
  %vm432 = vweird.f32 %v425
  %vm433 = vmor %vm431, %vm432
  %v434 = vsel %vm433, %v425, %v430
  %v435 = vrsqrt.pop %v418
  %v436 = vmul.f32 %v435, %v418
  %v437 = vmul.f32 %v436, %v435
  %v438 = vmul.f32 0.5, %v437
  %v439 = vsub.f32 1.5, %v438
  %v440 = vmul.f32 %v435, %v439
  %vm441 = vweird.f32 %v418
  %vm442 = vweird.f32 %v435
  %vm443 = vmor %vm441, %vm442
  %v444 = vsel %vm443, %v435, %v440
  %v445 = vrsqrt.pop %v419
  %v446 = vmul.f32 %v445, %v419
  %v447 = vmul.f32 %v446, %v445
  %v448 = vmul.f32 0.5, %v447
  %v449 = vsub.f32 1.5, %v448
  %v450 = vmul.f32 %v445, %v449
  %vm451 = vweird.f32 %v419
  %vm452 = vweird.f32 %v445
  %vm453 = vmor %vm451, %vm452
  %v454 = vsel %vm453, %v445, %v450
  %v455 = vrsqrt.pop %v420
  %v456 = vmul.f32 %v455, %v420
  %v457 = vmul.f32 %v456, %v455
  %v458 = vmul.f32 0.5, %v457
  %v459 = vsub.f32 1.5, %v458
  %v460 = vmul.f32 %v455, %v459
  %vm461 = vweird.f32 %v420
  %vm462 = vweird.f32 %v455
  %vm463 = vmor %vm461, %vm462
  %v464 = vsel %vm463, %v455, %v460
  %v465 = vrsqrt.pop %v421
  %v466 = vmul.f32 %v465, %v421
  %v467 = vmul.f32 %v466, %v465
  %v468 = vmul.f32 0.5, %v467
  %v469 = vsub.f32 1.5, %v468
  %v470 = vmul.f32 %v465, %v469
  %vm471 = vweird.f32 %v421
  %vm472 = vweird.f32 %v465
  %vm473 = vmor %vm471, %vm472
  %v474 = vsel %vm473, %v465, %v470
  %v475 = vrsqrt.pop %v422
  %v476 = vmul.f32 %v475, %v422
  %v477 = vmul.f32 %v476, %v475
  %v478 = vmul.f32 0.5, %v477
  %v479 = vsub.f32 1.5, %v478
  %v480 = vmul.f32 %v475, %v479
  %vm481 = vweird.f32 %v422
  %vm482 = vweird.f32 %v475
  %vm483 = vmor %vm481, %vm482
  %v484 = vsel %vm483, %v475, %v480
  %v485 = vrsqrt.pop %v423
  %v486 = vmul.f32 %v485, %v423
  %v487 = vmul.f32 %v486, %v485
  %v488 = vmul.f32 0.5, %v487
  %v489 = vsub.f32 1.5, %v488
  %v490 = vmul.f32 %v485, %v489
  %vm491 = vweird.f32 %v423
  %vm492 = vweird.f32 %v485
  %vm493 = vmor %vm491, %vm492
  %v494 = vsel %vm493, %v485, %v490
  %v495 = vrsqrt.pop %v424
  %v496 = vmul.f32 %v495, %v424
  %v497 = vmul.f32 %v496, %v495
  %v498 = vmul.f32 0.5, %v497
  %v499 = vsub.f32 1.5, %v498
  %v500 = vmul.f32 %v495, %v499
  %vm501 = vweird.f32 %v424
  %vm502 = vweird.f32 %v495
  %vm503 = vmor %vm501, %vm502
  %v504 = vsel %vm503, %v495, %v500
  %v505 = vmul.f32 %v81, %v434
  %v506 = vmul.f32 %v82, %v444
  %v507 = vmul.f32 %v83, %v454
  %v508 = vmul.f32 %v84, %v464
  %v509 = vmul.f32 %v85, %v474
  %v510 = vmul.f32 %v86, %v484
  %v511 = vmul.f32 %v87, %v494
  %v512 = vmul.f32 %v88, %v504
  %v513 = vmul.f32 %v385, %v505
  %v514 = vmul.f32 %v386, %v506
  %v515 = vmul.f32 %v387, %v507
  %v516 = vmul.f32 %v388, %v508
  %v517 = vmul.f32 %v389, %v509
  %v518 = vmul.f32 %v390, %v510
  %v519 = vmul.f32 %v391, %v511
  %v520 = vmul.f32 %v392, %v512
  %529 = vrot.lane.b32.xlu0 %v513, 1
  %v530 = vpop.permute.xlu0 %529
  %531 = vrot.lane.b32.xlu0 %v514, 1
  %v532 = vpop.permute.xlu0 %531
  %533 = vrot.lane.b32.xlu0 %v515, 1
  %v534 = vpop.permute.xlu0 %533
  %535 = vrot.lane.b32.xlu0 %v516, 1
  %v536 = vpop.permute.xlu0 %535
  %537 = vrot.lane.b32.xlu0 %v517, 1
  %v538 = vpop.permute.xlu0 %537
  %539 = vrot.lane.b32.xlu0 %v518, 1
  %v540 = vpop.permute.xlu0 %539
  %541 = vrot.lane.b32.xlu0 %v519, 1
  %v542 = vpop.permute.xlu0 %541
  %543 = vrot.lane.b32.xlu0 %v520, 1
  %v544 = vpop.permute.xlu0 %543
  %v553 = vsub.f32 %v81, %v530
  %v554 = vsub.f32 %v82, %v532
  %v555 = vsub.f32 %v83, %v534
  %v556 = vsub.f32 %v84, %v536
  %v557 = vsub.f32 %v85, %v538
  %v558 = vsub.f32 %v86, %v540
  %v559 = vsub.f32 %v87, %v542
  %v560 = vsub.f32 %v88, %v544
  %562 = vset.pattern.permute.xlu0 2
  %563 = vperm.xlu0 %562, %v505
  %v564 = vpop.permute.xlu0 %563
  %567 = vset.pattern.permute.xlu0 2
  %568 = vperm.xlu0 %567, %v506
  %v569 = vpop.permute.xlu0 %568
  %572 = vset.pattern.permute.xlu0 2
  %573 = vperm.xlu0 %572, %v507
  %v574 = vpop.permute.xlu0 %573
  %577 = vset.pattern.permute.xlu0 2
  %578 = vperm.xlu0 %577, %v508
  %v579 = vpop.permute.xlu0 %578
  %582 = vset.pattern.permute.xlu0 2
  %583 = vperm.xlu0 %582, %v509
  %v584 = vpop.permute.xlu0 %583
  %587 = vset.pattern.permute.xlu0 2
  %588 = vperm.xlu0 %587, %v510
  %v589 = vpop.permute.xlu0 %588
  %592 = vset.pattern.permute.xlu0 2
  %593 = vperm.xlu0 %592, %v511
  %v594 = vpop.permute.xlu0 %593
  %597 = vset.pattern.permute.xlu0 2
  %598 = vperm.xlu0 %597, %v512
  %v599 = vpop.permute.xlu0 %598
  %v601 = vmul.f32 %v310, %v564
  %v602 = vmul.f32 %v312, %v569
  %v603 = vmul.f32 %v315, %v574
  %v604 = vmul.f32 %v317, %v579
  %v605 = vmul.f32 %v320, %v584
  %v606 = vmul.f32 %v322, %v589
  %v607 = vmul.f32 %v325, %v594
  %v608 = vmul.f32 %v327, %v599
  %610 = vset.pattern.permute.xlu0 3
  %611 = vperm.xlu0 %610, %v553
  %v612 = vpop.permute.xlu0 %611
  %615 = vset.pattern.permute.xlu0 3
  %616 = vperm.xlu0 %615, %v554
  %v617 = vpop.permute.xlu0 %616
  %620 = vset.pattern.permute.xlu0 3
  %621 = vperm.xlu0 %620, %v555
  %v622 = vpop.permute.xlu0 %621
  %625 = vset.pattern.permute.xlu0 3
  %626 = vperm.xlu0 %625, %v556
  %v627 = vpop.permute.xlu0 %626
  %630 = vset.pattern.permute.xlu0 3
  %631 = vperm.xlu0 %630, %v557
  %v632 = vpop.permute.xlu0 %631
  %635 = vset.pattern.permute.xlu0 3
  %636 = vperm.xlu0 %635, %v558
  %v637 = vpop.permute.xlu0 %636
  %640 = vset.pattern.permute.xlu0 3
  %641 = vperm.xlu0 %640, %v559
  %v642 = vpop.permute.xlu0 %641
  %645 = vset.pattern.permute.xlu0 3
  %646 = vperm.xlu0 %645, %v560
  %v647 = vpop.permute.xlu0 %646
  %v649 = vadd.f32 %v601, %v612
  %v650 = vadd.f32 %v602, %v617
  %v651 = vadd.f32 %v603, %v622
  %v652 = vadd.f32 %v604, %v627
  %v653 = vadd.f32 %v605, %v632
  %v654 = vadd.f32 %v606, %v637
  %v655 = vadd.f32 %v607, %v642
  %v656 = vadd.f32 %v608, %v647
  %v657 = vmax.f32 %v649, 0.0
  %v658 = vmax.f32 %v650, 0.0
  %v659 = vmax.f32 %v651, 0.0
  %v660 = vmax.f32 %v652, 0.0
  %v661 = vmax.f32 %v653, 0.0
  %v662 = vmax.f32 %v654, 0.0
  %v663 = vmax.f32 %v655, 0.0
  %v664 = vmax.f32 %v656, 0.0
  %v665 = vpack.c.bf16 %v658, %v657
  %v666 = vpack.c.bf16 %v660, %v659
  %v667 = vpack.c.bf16 %v662, %v661
  %v668 = vpack.c.bf16 %v664, %v663
  %v669 = vld [vmem:[%s3] sm:$0xf]
  %v670 = vld [vmem:[%s3 + $0x4] sm:$0xf]
  %v671 = vld [vmem:[%s3 + $0x8] sm:$0xf]
  %v672 = vld [vmem:[%s3 + $0xc] sm:$0xf]
  %674 = vset.pattern.permute.xlu0 4
  %675 = vperm.xlu0 %674, %v81
  %v676 = vpop.permute.xlu0 %675
  %679 = vset.pattern.permute.xlu0 4
  %680 = vperm.xlu0 %679, %v82
  %v681 = vpop.permute.xlu0 %680
  %684 = vset.pattern.permute.xlu0 4
  %685 = vperm.xlu0 %684, %v83
  %v686 = vpop.permute.xlu0 %685
  %689 = vset.pattern.permute.xlu0 4
  %690 = vperm.xlu0 %689, %v84
  %v691 = vpop.permute.xlu0 %690
  %v697 = vunpack.c.l.b16 %v669
  %v698 = vunpack.c.l.b16 %v670
  %v699 = vunpack.c.l.b16 %v671
  %v700 = vunpack.c.l.b16 %v672
  %v701 = vpack.c.b16 %v698, %v697
  %v702 = vpack.c.b16 %v700, %v699
  %vm703 = vcmask 523264
  %v705 = vsel %vm703, %v701, 0
  %v708 = vsel %vm703, %v702, 0
  %710 = vmatpush.bf16.msra.mxu0 0
  %711 = vmatpush.bf16.msra.mxu0 0
  %712 = vmatpush.bf16.msra.mxu0 0
  %713 = vmatpush.bf16.msra.mxu0 0
  %714 = vmatpush.bf16.msra.mxu0 %v668
  %715 = vmatpush.bf16.msra.mxu0 %v667
  %716 = vmatpush.bf16.msra.mxu0 %v666
  %717 = vmatpush.bf16.msra.mxu0 %v665
  %718 = vmatmul.bf16.gmra.mxu0 %v705
  %v719 = vpop.f32.mrf.mxu0
  %v720 = vadd.f32 %v676, %v719
  %v721 = vpop.f32.mrf.mxu0
  %v722 = vadd.f32 %v681, %v721
  %723 = vmatmul.bf16.gmra.mxu0 %v708
  %v724 = vpop.f32.mrf.mxu0
  %v725 = vadd.f32 %v686, %v724
  %v726 = vpop.f32.mrf.mxu0
  %v727 = vadd.f32 %v691, %v726
  %728 = vdwg.mxu0
  %vm729 = vcmask 130048
  %730 = vst.msk [vmem:[%s5] sm:$0xff] %vm729, %v720
  %731 = vst.msk [vmem:[%s5 + $0x8] sm:$0xff] %vm729, %v722
  %732 = vst.msk [vmem:[%s5 + $0x10] sm:$0xff] %vm729, %v725
  %733 = vst.msk [vmem:[%s5 + $0x18] sm:$0xff] %vm729, %v727
  %738 = vrot.lane.b32.xlu0 %v720, 112
  %v739 = vpop.permute.xlu0 %738
  %740 = vrot.lane.b32.xlu0 %v722, 112
  %v741 = vpop.permute.xlu0 %740
  %742 = vrot.lane.b32.xlu0 %v725, 112
  %v743 = vpop.permute.xlu0 %742
  %744 = vrot.lane.b32.xlu0 %v727, 112
  %v745 = vpop.permute.xlu0 %744
  %s750 = scalar_lea.vmem %s5, 32
  %751 = vst.msk [vmem:[%s750] sm:$0xff] %vm729, %v739
  %752 = vst.msk [vmem:[%s750 + $0x8] sm:$0xff] %vm729, %v741
  %753 = vst.msk [vmem:[%s750 + $0x10] sm:$0xff] %vm729, %v743
  %754 = vst.msk [vmem:[%s750 + $0x18] sm:$0xff] %vm729, %v745
  // Predicated region
  $region22: #{tpu_custom_call.1} parent=0 // pred_check
    _
  $region23: #{tpu_custom_call.1} parent=0 // pred_check_branch
    %756 = sbr.rel (0) target = $region25
  $region24: #{tpu_custom_call.1} parent=0 // pred_region
    _
  $region25: #{tpu_custom_call.1} parent=0 // pred_fallthru
    _
  // Predicated region
  $region26: #{tpu_custom_call.1} parent=0 // pred_check
    _
  $region27: #{tpu_custom_call.1} parent=0 // pred_check_branch
    %758 = sbr.rel (0) target = $region29
  $region28: #{tpu_custom_call.1} parent=0 // pred_region
    _
  $region29: #{tpu_custom_call.1} parent=0 // pred_fallthru
    _

</llo_original>
